<compile_context>
chip_gen: v7x
topology: tpu7x:2x2x1
jax: 0.10.0
libtpu: 0.0.40
codegen_flags: <defaults>
</compile_context>

<pallas_src>
import functools

import jax
import jax.numpy as jnp
from jax import lax
from jax.experimental import pallas as pl
from jax.experimental.pallas import tpu as pltpu


def _depth_kernel(xT_ref, w1_ref, w2_ref, b2_ref, w3_ref, b3_ref, o_ref, *, chunk):
    """One grid step: (16, tm) bf16 patch block -> (1, tm) f32 output block."""
    # Tiny resident weights: loaded once per grid step, live in vregs.
    w1 = w1_ref[...]          # (64, 17) bf16  block-diag conv1 weights + folded b1 column
    w2 = w2_ref[...]          # (32, 64) bf16
    b2 = b2_ref[...]          # (32, 1)  f32
    w3 = w3_ref[...]          # (32, 1)  f32
    b3 = b3_ref[0, 0]         # f32 scalar (SMEM)
    # Hoisted out of the loop (JAX does not CSE broadcasts inside loops).
    ones_row = jnp.ones((1, chunk), dtype=xT_ref.dtype)

    nchunks = o_ref.shape[-1] // chunk                     # static

    def body(ci, carry):
        s = pl.multiple_of(ci * chunk, chunk)
        # conv1 input: 16 patch rows + a ones row, so b1 rides through the MXU
        # as the 17th column of w1 instead of a per-element VPU add.
        p = jnp.concatenate([xT_ref[:, pl.ds(s, chunk)], ones_row], axis=0)    # (17, ck) bf16
        # conv1 (+bias, folded) + relu -> (64, ck) f32
        h1 = jnp.maximum(jnp.dot(w1, p, preferred_element_type=jnp.float32), 0.0)
        # relu stays f32 (v5e-safe); single cast to bf16 as the conv2 MXU input.
        h2 = jnp.dot(w2, h1.astype(jnp.bfloat16),
                     preferred_element_type=jnp.float32)                        # (32, ck) f32
        h2 = jnp.maximum(h2 + b2, 0.0)
        # conv3 (1x1): VPU multiply + cross-sublane reduce (no 1-wide MXU pop).
        out = jnp.sum(h2 * w3, axis=0, keepdims=True) + b3                      # (1, ck) f32
        o_ref[:, pl.ds(s, chunk)] = out.astype(o_ref.dtype)
        return carry

    lax.fori_loop(0, nchunks, body, 0)


def _round_up(x, m):
    return (x + m - 1) // m * m


@functools.partial(jax.jit, static_argnames=("block_m", "chunk"))
def depth_feature_extractor(x, params, block_m=32768, chunk=512):
    """x: (N, 1, H, W) float32 NCHW.  Returns (N, 1, H//4, W//4) float32."""
    w1, b1, w2, b2, w3, b3 = params
    N, C, H, W = x.shape
    assert C == 1 and H % 4 == 0 and W % 4 == 0
    assert chunk % 128 == 0 and chunk > 0
    block_m = max(chunk, (block_m // chunk) * chunk)
    Ho, Wo = H // 4, W // 4
    M = N * Ho * Wo

    # ---- im2col, transposed: (16, M), rows ordered (pi, pj, ki, kj); pixel
    #      index m = n*Ho*Wo + i*Wo + j lives on lanes.  (Wrapper-side; see the
    #      TODO at the top of the file.)
    p = x.reshape(N, Ho, 2, 2, Wo, 2, 2)          # (n, i, pi, ki, j, pj, kj)
    p = p.transpose(2, 5, 3, 6, 0, 1, 4)          # (pi, pj, ki, kj, n, i, j)
    patchesT = p.reshape(16, M).astype(jnp.bfloat16)

    # ---- repack conv weights as (out, in) matmul matrices ----
    # conv1: block-diagonal over the 4 patch sub-positions q = 2*pi + pj, with
    # b1 folded in as the 17th column (consumed by the in-kernel ones row).
    w1_mat = w1.reshape(16, 4)                    # (c1, ki*2 + kj)
    W1aug = jnp.zeros((64, 17), jnp.float32)
    for q in range(4):
        W1aug = W1aug.at[16 * q:16 * q + 16, 4 * q:4 * q + 4].set(w1_mat)
    W1aug = W1aug.at[:, 16].set(jnp.tile(b1, 4))
    W1aug = W1aug.astype(jnp.bfloat16)
    # conv2: columns ordered (kh, kw, c1) == (pi, pj, c1) to match h1 rows.
    W2m = jnp.transpose(w2, (0, 2, 3, 1)).reshape(32, 64).astype(jnp.bfloat16)
    B2 = b2.reshape(32, 1).astype(jnp.float32)
    W3 = w3.reshape(32, 1).astype(jnp.float32)
    B3 = b3.reshape(1, 1).astype(jnp.float32)     # scalar, lives in SMEM

    # ---- lane tiling: big blocks to amortise per-step overhead, but >=2 grid
    #      steps whenever possible so v7x can shard across its two TensorCores.
    tm = min(block_m, max(chunk, _round_up(pl.cdiv(M, 2), chunk)))
    grid = pl.cdiv(M, tm)
    M_pad = grid * tm
    if M_pad != M:
        patchesT = jnp.pad(patchesT, ((0, 0), (0, M_pad - M)))

    # Right-sized VMEM limit: double-buffered streamed patches + output blocks
    # plus headroom (intermediates stay in vregs thanks to the chunked loop).
    dbuf = 2 * (16 * tm * 2 + 4 * tm)
    vlim = int(min(32 << 20, max(16 << 20, dbuf + (8 << 20))))

    kernel = functools.partial(_depth_kernel, chunk=chunk)
    out = pl.pallas_call(
        kernel,
        out_shape=jax.ShapeDtypeStruct((1, M_pad), jnp.float32),
        grid_spec=pltpu.PrefetchScalarGridSpec(
            num_scalar_prefetch=0,
            grid=(grid,),
            in_specs=[
                pl.BlockSpec((16, tm), lambda i: (0, i)),             # patches (streamed)
                pl.BlockSpec((64, 17), lambda i: (0, 0)),             # W1 (+bias col), resident
                pl.BlockSpec((32, 64), lambda i: (0, 0)),             # W2
                pl.BlockSpec((32, 1), lambda i: (0, 0)),              # B2
                pl.BlockSpec((32, 1), lambda i: (0, 0)),              # W3
                pl.BlockSpec(memory_space=pltpu.MemorySpace.SMEM),    # B3 scalar
            ],
            out_specs=pl.BlockSpec((1, tm), lambda i: (0, i)),        # lane-dense output
        ),
        compiler_params=pltpu.CompilerParams(
            dimension_semantics=("parallel",),
            vmem_limit_bytes=vlim),
    )(patchesT, W1aug, W2m, B2, W3, B3)

    return out[0, :M].reshape(N, Ho, Wo)[:, None, :, :]               # back to NCHW


def _reference(x, params):
    w1, b1, w2, b2, w3, b3 = params
    dn = ("NCHW", "OIHW", "NCHW")
    y = jax.lax.conv_general_dilated(x, w1, (2, 2), "VALID",
                                     dimension_numbers=dn) + b1.reshape(1, -1, 1, 1)
    y = jnp.maximum(y, 0.0)
    y = jax.lax.conv_general_dilated(y, w2, (2, 2), "VALID",
                                     dimension_numbers=dn) + b2.reshape(1, -1, 1, 1)
    y = jnp.maximum(y, 0.0)
    y = jax.lax.conv_general_dilated(y, w3, (1, 1), "VALID",
                                     dimension_numbers=dn) + b3.reshape(1, -1, 1, 1)
    return y


if __name__ == "__main__":
    key = jax.random.PRNGKey(0)
    k1, k2, k3, k4, k5, k6, kx, kx2 = jax.random.split(key, 8)

    # PyTorch-default-like uniform inits for conv1/conv2.
    w1 = jax.random.uniform(k1, (16, 1, 2, 2), jnp.float32, -0.5, 0.5)
    b1 = jax.random.uniform(k2, (16,), jnp.float32, -0.5, 0.5)
    w2 = jax.random.uniform(k3, (32, 16, 2, 2), jnp.float32, -0.125, 0.125)
    b2 = jax.random.uniform(k4, (32,), jnp.float32, -0.125, 0.125)

    # The module zero-inits conv3 (first param set) ...
    params_init = (w1, b1, w2, b2,
                   jnp.zeros((1, 32, 1, 1), jnp.float32),
                   jnp.zeros((1,), jnp.float32))
    # ... but also validate the full compute path with nonzero conv3 weights.
    params_nz = (w1, b1, w2, b2,
                 jax.random.uniform(k5, (1, 32, 1, 1), jnp.float32, -0.2, 0.2),
                 jax.random.uniform(k6, (1,), jnp.float32, -0.2, 0.2))

    x = jax.random.uniform(kx, (2, 1, 16, 16), jnp.float32)    # single grid step, 1 chunk
    x2 = jax.random.uniform(kx2, (2, 1, 64, 64), jnp.float32)  # 2 grid steps x 2 chunks

    for params in (params_init, params_nz):
        out = jax.block_until_ready(depth_feature_extractor(x, params))
        assert out.shape == (2, 1, 4, 4), out.shape
        ref = _reference(x, params)
        assert jnp.allclose(out, ref, atol=2e-2, rtol=2e-2), "mismatch (16x16)"

        out2 = jax.block_until_ready(
            depth_feature_extractor(x2, params, block_m=256, chunk=128))
        assert out2.shape == (2, 1, 16, 16), out2.shape
        ref2 = _reference(x2, params)
        assert jnp.allclose(out2, ref2, atol=2e-2, rtol=2e-2), "mismatch (64x64)"

    print("KERNEL_OK")
</pallas_src>

<mosaic_0001>
module attributes {stable_mosaic.version = 11 : i64} {
  func.func @_depth_kernel(%arg0: i32, %arg1: memref<16x512xbf16, #tpu.memory_space<vmem>>, %arg2: memref<64x17xbf16, #tpu.memory_space<vmem>>, %arg3: memref<32x64xbf16, #tpu.memory_space<vmem>>, %arg4: memref<32x1xf32, #tpu.memory_space<vmem>>, %arg5: memref<32x1xf32, #tpu.memory_space<vmem>>, %arg6: memref<1x1xf32, #tpu.memory_space<smem>>, %arg7: memref<1x512xf32, #tpu.memory_space<vmem>>) attributes {dimension_semantics = [#tpu.dimension_semantics<parallel>], iteration_bounds = array<i64: 1>, scalar_prefetch = 0 : i64, scratch_operands = 0 : i64, tpu.core_type = #tpu.core_type<tc>, window_params = [{transform_indices = @transform_0, window_bounds = array<i64: 16, 512>}, {pipeline_mode = #tpu.pipeline_mode<synchronous>, transform_indices = @transform_1, window_bounds = array<i64: 64, 17>}, {pipeline_mode = #tpu.pipeline_mode<synchronous>, transform_indices = @transform_2, window_bounds = array<i64: 32, 64>}, {pipeline_mode = #tpu.pipeline_mode<synchronous>, transform_indices = @transform_3, window_bounds = array<i64: 32, 1>}, {pipeline_mode = #tpu.pipeline_mode<synchronous>, transform_indices = @transform_4, window_bounds = array<i64: 32, 1>}, {transform_indices = @transform_5, window_bounds = array<i64: 1, 1>}, {transform_indices = @transform_6, window_bounds = array<i64: 1, 512>}]} {
    %c0 = arith.constant 0 : index
    %c0_0 = arith.constant 0 : index
    %0 = vector.load %arg2[%c0, %c0_0] : memref<64x17xbf16, #tpu.memory_space<vmem>>, vector<64x17xbf16>
    %c0_1 = arith.constant 0 : index
    %c0_2 = arith.constant 0 : index
    %1 = vector.load %arg3[%c0_1, %c0_2] : memref<32x64xbf16, #tpu.memory_space<vmem>>, vector<32x64xbf16>
    %c0_3 = arith.constant 0 : index
    %c0_4 = arith.constant 0 : index
    %2 = vector.load %arg4[%c0_3, %c0_4] : memref<32x1xf32, #tpu.memory_space<vmem>>, vector<32x1xf32>
    %c0_5 = arith.constant 0 : index
    %c0_6 = arith.constant 0 : index
    %3 = vector.load %arg5[%c0_5, %c0_6] : memref<32x1xf32, #tpu.memory_space<vmem>>, vector<32x1xf32>
    %c0_7 = arith.constant 0 : index
    %c0_8 = arith.constant 0 : index
    %4 = memref.load %arg6[%c0_7, %c0_8] : memref<1x1xf32, #tpu.memory_space<smem>>
    %cst = arith.constant 1.000000e+00 : bf16
    %5 = vector.broadcast %cst : bf16 to vector<1x512xbf16>
    %c0_i32 = arith.constant 0 : i32
    %c512_i32 = arith.constant 512 : i32
    %6 = arith.muli %c0_i32, %c512_i32 : i32
    %7 = tpu.assume_multiple %6, 512 : i32
    %c0_9 = arith.constant 0 : index
    %8 = arith.index_cast %7 : i32 to index
    %9 = vector.load %arg1[%c0_9, %8] : memref<16x512xbf16, #tpu.memory_space<vmem>>, vector<16x512xbf16>
    %10 = tpu.concatenate %9, %5 in 0 : vector<16x512xbf16>, vector<1x512xbf16> -> vector<17x512xbf16>
    %cst_10 = arith.constant dense<0.000000e+00> : vector<64x512xf32>
    %11 = tpu.matmul %0, %10, %cst_10 {dimension_numbers = #tpu.dot_dimension_numbers<[1], [0], [0], [1], [0, 0, 1, 1], [], []>} : vector<64x17xbf16>, vector<17x512xbf16>, vector<64x512xf32> -> vector<64x512xf32>
    %cst_11 = arith.constant 0.000000e+00 : f32
    %12 = vector.broadcast %cst_11 : f32 to vector<64x512xf32>
    %13 = arith.maximumf %11, %12 : vector<64x512xf32>
    %14 = arith.truncf %13 : vector<64x512xf32> to vector<64x512xbf16>
    %cst_12 = arith.constant dense<0.000000e+00> : vector<32x512xf32>
    %15 = tpu.matmul %1, %14, %cst_12 {dimension_numbers = #tpu.dot_dimension_numbers<[1], [0], [0], [1], [0, 0, 1, 1], [], []>} : vector<32x64xbf16>, vector<64x512xbf16>, vector<32x512xf32> -> vector<32x512xf32>
    %16 = vector.broadcast %2 : vector<32x1xf32> to vector<32x512xf32>
    %17 = arith.addf %15, %16 : vector<32x512xf32>
    %cst_13 = arith.constant 0.000000e+00 : f32
    %18 = vector.broadcast %cst_13 : f32 to vector<32x512xf32>
    %19 = arith.maximumf %17, %18 : vector<32x512xf32>
    %20 = vector.broadcast %3 : vector<32x1xf32> to vector<32x512xf32>
    %21 = arith.mulf %19, %20 : vector<32x512xf32>
    %cst_14 = arith.constant dense<0.000000e+00> : vector<512xf32>
    %22 = vector.multi_reduction <add>, %21, %cst_14 [0] : vector<32x512xf32> to vector<512xf32>
    %23 = vector.shape_cast %22 : vector<512xf32> to vector<1x512xf32>
    %24 = vector.broadcast %4 : f32 to vector<1x512xf32>
    %25 = arith.addf %23, %24 : vector<1x512xf32>
    %c0_15 = arith.constant 0 : index
    %26 = arith.index_cast %7 : i32 to index
    %27 = vector.load %arg7[%c0_15, %26] : memref<1x512xf32, #tpu.memory_space<vmem>>, vector<1x512xf32>
    tpu.vector_store %arg7[%c0_15, %26], %25 {strides = array<i32>} : memref<1x512xf32, #tpu.memory_space<vmem>>, vector<1x512xf32>,
    %c1_i32 = arith.constant 1 : i32
    return
  }
  func.func @transform_0(%arg0: i32) -> (i32, i32) {
    %c0_i32 = arith.constant 0 : i32
    %c0_i32_0 = arith.constant 0 : i32
    return %c0_i32, %arg0 : i32, i32
  }
  func.func @transform_1(%arg0: i32) -> (i32, i32) {
    %c0_i32 = arith.constant 0 : i32
    %c0_i32_0 = arith.constant 0 : i32
    %c0_i32_1 = arith.constant 0 : i32
    return %c0_i32, %c0_i32_0 : i32, i32
  }
  func.func @transform_2(%arg0: i32) -> (i32, i32) {
    %c0_i32 = arith.constant 0 : i32
    %c0_i32_0 = arith.constant 0 : i32
    %c0_i32_1 = arith.constant 0 : i32
    return %c0_i32, %c0_i32_0 : i32, i32
  }
  func.func @transform_3(%arg0: i32) -> (i32, i32) {
    %c0_i32 = arith.constant 0 : i32
    %c0_i32_0 = arith.constant 0 : i32
    %c0_i32_1 = arith.constant 0 : i32
    return %c0_i32, %c0_i32_0 : i32, i32
  }
  func.func @transform_4(%arg0: i32) -> (i32, i32) {
    %c0_i32 = arith.constant 0 : i32
    %c0_i32_0 = arith.constant 0 : i32
    %c0_i32_1 = arith.constant 0 : i32
    return %c0_i32, %c0_i32_0 : i32, i32
  }
  func.func @transform_5(%arg0: i32) -> (i32, i32) {
    %c0_i32 = arith.constant 0 : i32
    %c0_i32_0 = arith.constant 0 : i32
    %c0_i32_1 = arith.constant 0 : i32
    return %c0_i32, %c0_i32_0 : i32, i32
  }
  func.func @transform_6(%arg0: i32) -> (i32, i32) {
    %c0_i32 = arith.constant 0 : i32
    %c0_i32_0 = arith.constant 0 : i32
    return %c0_i32, %arg0 : i32, i32
  }
}

</mosaic_0001>

<llo_original>
// kernel: tile.8
$region0: #{tile.8}
  #allocation0 [shape = 's32[1]{0}', space=sflag, size = 0x4, scoped, tag = 'scoped memory for tile.8']
  %s0 = inlined_call_operand.vmem [shape: f32[16], index: 0, kind: input, shape index: {}]
  %s1 = inlined_call_operand.vmem [shape: bf16[4,16], index: 1, kind: output, shape index: {}]
  // Predicated region
  $region2: #{tile.8} parent=0 // pred_check
    _
  $region3: #{tile.8} parent=0 // pred_check_branch
    %3 = sbr.rel (0) target = $region5
  $region4: #{tile.8} parent=0 // pred_region
    _
  $region5: #{tile.8} parent=0 // pred_fallthru
    _
  %v4 = vld [vmem:[%s0] ss:$0 sm:$0xff]
  %v5 = vpack.c.bf16 0.0, %v4
  %6 = vst [vmem:[%s1] sm:$0x3] %v5

// kernel: squeeze.1
$region0: #{squeeze.1}
  %s0 = inlined_call_operand.vmem [shape: f32[32], index: 0, kind: input, shape index: {}]
  %s1 = inlined_call_operand.hbm [shape: f32[2,1,4,4], index: 1, kind: output, shape index: {}]
  $region1: #{squeeze.1} parent=0
    #allocation0 [shape = 'u8[4096]{0}', space=vmem, size = 0x1000, scoped, tag = 'operand span for operand 1']
    #allocation1 [shape = 's32[1]{0}', space=sflag, size = 0x4, scoped, tag = 'scoped memory for squeeze.1']
    #allocation2 [shape = 'u8[8192]{0}', space=vmem, size = 0x2000, scoped, tag = 'scoped mem for output reshape']
    #allocation3 [shape = 'u8[4096]{0}', space=vmem, size = 0x1000, scoped, tag = 'scoped mem for input reshape']
    %2 = vsyncpa [#allocation1], 0
    %s4 = sshllo.u32 0, 1
    %v5 = vld [vmem:[%s0] sm:%s4]
    %6 = vst [vmem:[#allocation3] sm:%s4] %v5
    %v7 = vld [vmem:[#allocation3] sm:$0x1]
    %vm8 = vcmask 31744
    %9 = vst.msk [vmem:[#allocation2] sm:$0x1] %vm8, %v7
    %v10 = vld [vmem:[#allocation3] sm:$0x1]
    %11 = vrot.lane.b32.xlu0 %v10, 124
    %v12 = vpop.permute.xlu0 %11
    %vm13 = vcmask 31744
    %s14 = scalar_lea.vmem [#allocation2], 1
    %15 = vst.msk [vmem:[%s14] sm:$0x1] %vm13, %v12
    %v16 = vld [vmem:[#allocation3] sm:$0x1]
    %17 = vrot.lane.b32.xlu0 %v16, 120
    %v18 = vpop.permute.xlu0 %17
    %vm19 = vcmask 31744
    %s20 = scalar_lea.vmem [#allocation2], 2
    %21 = vst.msk [vmem:[%s20] sm:$0x1] %vm19, %v18
    %v22 = vld [vmem:[#allocation3] sm:$0x1]
    %23 = vrot.lane.b32.xlu0 %v22, 116
    %v24 = vpop.permute.xlu0 %23
    %vm25 = vcmask 31744
    %s26 = scalar_lea.vmem [#allocation2], 3
    %27 = vst.msk [vmem:[%s26] sm:$0x1] %vm25, %v24
    %v28 = vld [vmem:[#allocation3] sm:$0x1]
    %29 = vrot.lane.b32.xlu0 %v28, 112
    %v30 = vpop.permute.xlu0 %29
    %vm31 = vcmask 31744
    %s32 = scalar_lea.vmem [#allocation2], 8
    %33 = vst.msk [vmem:[%s32] sm:$0x1] %vm31, %v30
    %v34 = vld [vmem:[#allocation3] sm:$0x1]
    %35 = vrot.lane.b32.xlu0 %v34, 108
    %v36 = vpop.permute.xlu0 %35
    %vm37 = vcmask 31744
    %s38 = scalar_lea.vmem [#allocation2], 9
    %39 = vst.msk [vmem:[%s38] sm:$0x1] %vm37, %v36
    %v40 = vld [vmem:[#allocation3] sm:$0x1]
    %41 = vrot.lane.b32.xlu0 %v40, 104
    %v42 = vpop.permute.xlu0 %41
    %vm43 = vcmask 31744
    %s44 = scalar_lea.vmem [#allocation2], 10
    %45 = vst.msk [vmem:[%s44] sm:$0x1] %vm43, %v42
    %v46 = vld [vmem:[#allocation3] sm:$0x1]
    %47 = vrot.lane.b32.xlu0 %v46, 100
    %v48 = vpop.permute.xlu0 %47
    %vm49 = vcmask 31744
    %s50 = scalar_lea.vmem [#allocation2], 11
    %51 = vst.msk [vmem:[%s50] sm:$0x1] %vm49, %v48
    %s53 = sshllo.u32 0, 4
    %v55 = vld [vmem:[#allocation2] sm:%s53]
    %s56 = sshllo.u32 0, 4
    %57 = vst [vmem:[#allocation0] sm:%s56] %v55
    %s58 = scalar_lea.vmem [#allocation2], 8
    %v59 = vld [vmem:[%s58] sm:%s53]
    %s60 = sshllo.u32 0, 4
    %s61 = scalar_lea.vmem [#allocation0], 4
    %62 = vst [vmem:[%s61] sm:%s60] %v59
    %s64 = ssub.s32 128, 128
    %65 = vsyncadd [#allocation1], %s64
    %s67 = sshll.u32 [#allocation0], 4
    %s68 = int_to_ptr.vmem [resolvable:$true] %s67
    %70 = dma.vmem_to_hbm [thread:$0]  %s68, 128, %s1, [#allocation1]
    %71 = dma.done [#allocation1], 128
    %72 = vsyncpa [#allocation1], 1

// kernel: depth_feature_extractor.1
$region0: #{depth_feature_extractor.1}
  #allocation0 [shape = 'u32[]', space=smem, size = 0x4, offset = 0x4, fixed_abs, tag = 'smem constant byte address 0x4 - core index']
  #allocation1 [shape = 'u32[144,128]{1,0:T(1,128)}', space=vmem, size = 0x12000, scoped, tag = 'internal scratch']
  #allocation2 [shape = 'f32[1,1]{1,0:T(1,128)S(6)}', space=smem, size = 0x200, scoped, tag = 'scoped memory for depth_feature_extractor.1']
  %s0 = inlined_call_operand.vmem [shape: bf16[16,512], index: 0, kind: input, shape index: {}]
  %s1 = inlined_call_operand.vmem [shape: bf16[64,17], index: 1, kind: input, shape index: {}]
  %s2 = inlined_call_operand.vmem [shape: bf16[32,64], index: 2, kind: input, shape index: {}]
  %s3 = inlined_call_operand.vmem [shape: f32[32,1], index: 3, kind: input, shape index: {}]
  %s4 = inlined_call_operand.vmem [shape: f32[32,1], index: 4, kind: input, shape index: {}]
  %s5 = inlined_call_operand.<no memory space> [shape: f32[1,1], index: 5, kind: input, shape index: {}]
  %s6 = inlined_call_operand.vmem [shape: f32[1,512], index: 6, kind: output, shape index: {}]
  %s7 = sld [smem:[#allocation0]]
  $region34: #{depth_feature_extractor.1} parent=0
    _
  %s9 = ssub.s32 1, %s7
  %s10 = scalar_select 0, %s9, %s7
  %11 = sst [smem:[#allocation2]] %s5
  // Predicated region
  $region2: #{depth_feature_extractor.1} parent=0 // pred_check
    _
  $region3: #{depth_feature_extractor.1} parent=0 // pred_check_branch
    %13 = sbr.rel (0) target = $region5
  $region4: #{depth_feature_extractor.1} parent=0 // pred_region
    _
  $region5: #{depth_feature_extractor.1} parent=0 // pred_fallthru
    _
  // Predicated region
  $region6: #{depth_feature_extractor.1} parent=0 // pred_check
    _
  $region7: #{depth_feature_extractor.1} parent=0 // pred_check_branch
    %15 = sbr.rel (0) target = $region9
  $region8: #{depth_feature_extractor.1} parent=0 // pred_region
    _
  $region9: #{depth_feature_extractor.1} parent=0 // pred_fallthru
    _
  // Predicated region
  $region10: #{depth_feature_extractor.1} parent=0 // pred_check
    _
  $region11: #{depth_feature_extractor.1} parent=0 // pred_check_branch
    %17 = sbr.rel (0) target = $region13
  $region12: #{depth_feature_extractor.1} parent=0 // pred_region
    _
  $region13: #{depth_feature_extractor.1} parent=0 // pred_fallthru
    _
  // Predicated region
  $region14: #{depth_feature_extractor.1} parent=0 // pred_check
    _
  $region15: #{depth_feature_extractor.1} parent=0 // pred_check_branch
    %19 = sbr.rel (0) target = $region17
  $region16: #{depth_feature_extractor.1} parent=0 // pred_region
    _
  $region17: #{depth_feature_extractor.1} parent=0 // pred_fallthru
    _
  // Predicated region
  $region18: #{depth_feature_extractor.1} parent=0 // pred_check
    _
  $region19: #{depth_feature_extractor.1} parent=0 // pred_check_branch
    %21 = sbr.rel (0) target = $region21
  $region20: #{depth_feature_extractor.1} parent=0 // pred_region
    _
  $region21: #{depth_feature_extractor.1} parent=0 // pred_fallthru
    _
  // Predicated region
  $region22: #{depth_feature_extractor.1} parent=0 // pred_check
    _
  $region23: #{depth_feature_extractor.1} parent=0 // pred_check_branch
    %23 = sbr.rel (0) target = $region25
  $region24: #{depth_feature_extractor.1} parent=0 // pred_region
    _
  $region25: #{depth_feature_extractor.1} parent=0 // pred_fallthru
    _
  %v26 = vld [vmem:[%s1] sm:$0xf]
  %v27 = vld [vmem:[%s1 + $0x4] sm:$0xf]
  %v28 = vld [vmem:[%s1 + $0x8] sm:$0xf]
  %v29 = vld [vmem:[%s1 + $0xc] sm:$0xf]
  %v30 = vld [vmem:[%s1 + $0x10] sm:$0xf]
  %v31 = vld [vmem:[%s1 + $0x14] sm:$0xf]
  %v32 = vld [vmem:[%s1 + $0x18] sm:$0xf]
  %v33 = vld [vmem:[%s1 + $0x1c] sm:$0xf]
  %v34 = vld [vmem:[%s2] sm:$0xf]
  %v35 = vld [vmem:[%s2 + $0x4] sm:$0xf]
  %v36 = vld [vmem:[%s2 + $0x8] sm:$0xf]
  %v37 = vld [vmem:[%s2 + $0xc] sm:$0xf]
  %v38 = vld [vmem:[%s3] sm:$0xff]
  %v39 = vld [vmem:[%s3 + $0x8] sm:$0xff]
  %v40 = vld [vmem:[%s3 + $0x10] sm:$0xff]
  %v41 = vld [vmem:[%s3 + $0x18] sm:$0xff]
  %v42 = vld [vmem:[%s4] sm:$0xff]
  %v43 = vld [vmem:[%s4 + $0x8] sm:$0xff]
  %v44 = vld [vmem:[%s4 + $0x10] sm:$0xff]
  %v45 = vld [vmem:[%s4 + $0x18] sm:$0xff]
  %s46 = sld [smem:[#allocation2]]
  %v47 = vld [vmem:[%s0] sm:$0xff]
  %v48 = vld [vmem:[%s0 + $0x8] sm:$0xff]
  %v49 = vld [vmem:[%s0 + $0x10] sm:$0xff]
  %v50 = vld [vmem:[%s0 + $0x18] sm:$0xff]
  %v55 = vunpack.c.l.b16 %v47
  %v56 = vunpack.c.h.b16 %v47
  %v57 = vunpack.c.l.b16 %v48
  %v58 = vunpack.c.h.b16 %v48
  %v59 = vunpack.c.l.b16 %v49
  %v60 = vunpack.c.h.b16 %v49
  %v61 = vunpack.c.l.b16 %v50
  %v62 = vunpack.c.h.b16 %v50
  %v63 = vpack.c.b16 %v59, %v55
  %v64 = vpack.c.b16 %v60, %v56
  %v65 = vpack.c.b16 %v61, %v57
  %v66 = vpack.c.b16 %v62, %v58
  %v79 = vunpack.c.l.b16 %v26
  %v80 = vunpack.c.l.b16 %v27
  %v81 = vunpack.c.l.b16 %v28
  %v82 = vunpack.c.l.b16 %v29
  %v83 = vunpack.c.l.b16 %v30
  %v84 = vunpack.c.l.b16 %v31
  %v85 = vunpack.c.l.b16 %v32
  %v86 = vunpack.c.l.b16 %v33
  %v87 = vpack.c.b16 %v80, %v79
  %v88 = vpack.c.b16 %v82, %v81
  %v89 = vpack.c.b16 %v84, %v83
  %v90 = vpack.c.b16 %v86, %v85
  %vm91 = vcmask 138240
  %v93 = vsel %vm91, %v87, 0
  %v96 = vsel %vm91, %v88, 0
  %v99 = vsel %vm91, %v89, 0
  %v102 = vsel %vm91, %v90, 0
  %vm104 = vcmask 1040384
  %v105 = vsel 0, 4294967295, 65535
  %v106 = vsel %vm104, %v105, 0
  %v108 = vand.u32 1065369472, %v106
  %110 = vmatprep.subr.bf16.mxu0 %v64
  %111 = vmatpush1.bf16.msra.mxu0 %v63
  %112 = vmatprep.subr.bf16.mxu0 %v108
  %113 = vmatpush1.bf16.msra.mxu0 %v108
  %114 = vmatprep.subr.bf16.mxu0 0
  %115 = vmatpush1.bf16.msra.mxu0 0
  %116 = vmatprep.subr.bf16.mxu0 0
  %117 = vmatpush1.bf16.msra.mxu0 0
  %118 = vmatprep.subr.bf16.mxu0 0
  %119 = vmatpush1.bf16.msra.mxu0 0
  %120 = vmatprep.subr.bf16.mxu0 0
  %121 = vmatpush1.bf16.msra.mxu0 0
  %122 = vmatprep.subr.bf16.mxu0 0
  %123 = vmatpush1.bf16.msra.mxu0 0
  %124 = vmatprep.subr.bf16.mxu0 0
  %125 = vmatpush1.bf16.msra.mxu0 0
  %126 = vmatprep.subr.bf16.mxu0 0
  %127 = vmatpush1.bf16.msra.mxu0 0
  %128 = vmatprep.subr.bf16.mxu0 0
  %129 = vmatpush1.bf16.msra.mxu0 0
  %130 = vmatprep.subr.bf16.mxu0 0
  %131 = vmatpush1.bf16.msra.mxu0 0
  %132 = vmatprep.subr.bf16.mxu0 0
  %133 = vmatpush1.bf16.msra.mxu0 0
  %134 = vmatprep.subr.bf16.mxu0 0
  %135 = vmatpush1.bf16.msra.mxu0 0
  %136 = vmatprep.subr.bf16.mxu0 0
  %137 = vmatpush1.bf16.msra.mxu0 0
  %138 = vmatprep.subr.bf16.mxu0 0
  %139 = vmatpush1.bf16.msra.mxu0 0
  %140 = vmatprep.subr.bf16.mxu0 0
  %141 = vmatpush1.bf16.msra.mxu0 0
  %142 = vmatprep.mubr.bf16.mxu0 0
  %143 = vmatmul.mubr.bf16.gmra.mrb[0].mxu0 %v93
  %v144 = vpop.f32.mrb[0].mxu0
  %v145 = vadd.f32 0.0, %v144
  %v146 = vpop.f32.mrb[0].mxu0
  %v147 = vadd.f32 0.0, %v146
  %v148 = vpop.f32.mrb[0].mxu0
  %v149 = vadd.f32 0.0, %v148
  %v150 = vpop.f32.mrb[0].mxu0
  %v151 = vadd.f32 0.0, %v150
  %152 = vmatprep.mubr.bf16.mxu0 0
  %153 = vmatmul.mubr.bf16.gmra.mrb[0].mxu0 %v96
  %v154 = vpop.f32.mrb[0].mxu0
  %v155 = vadd.f32 0.0, %v154
  %v156 = vpop.f32.mrb[0].mxu0
  %v157 = vadd.f32 0.0, %v156
  %v158 = vpop.f32.mrb[0].mxu0
  %v159 = vadd.f32 0.0, %v158
  %v160 = vpop.f32.mrb[0].mxu0
  %v161 = vadd.f32 0.0, %v160
  %162 = vmatprep.mubr.bf16.mxu0 0
  %163 = vmatmul.mubr.bf16.gmra.mrb[0].mxu0 %v99
  %v164 = vpop.f32.mrb[0].mxu0
  %v165 = vadd.f32 0.0, %v164
  %v166 = vpop.f32.mrb[0].mxu0
  %v167 = vadd.f32 0.0, %v166
  %v168 = vpop.f32.mrb[0].mxu0
  %v169 = vadd.f32 0.0, %v168
  %v170 = vpop.f32.mrb[0].mxu0
  %v171 = vadd.f32 0.0, %v170
  %172 = vmatprep.mubr.bf16.mxu0 0
  %173 = vmatmul.mubr.bf16.gmra.mrb[0].mxu0 %v102
  %v174 = vpop.f32.mrb[0].mxu0
  %v175 = vadd.f32 0.0, %v174
  %v176 = vpop.f32.mrb[0].mxu0
  %v177 = vadd.f32 0.0, %v176
  %v178 = vpop.f32.mrb[0].mxu0
  %v179 = vadd.f32 0.0, %v178
  %v180 = vpop.f32.mrb[0].mxu0
  %v181 = vadd.f32 0.0, %v180
  %182 = vdwg.mxu0
  %183 = vmatprep.subr.bf16.mxu0 %v66
  %184 = vmatpush1.bf16.msra.mxu0 %v65
  %185 = vmatprep.subr.bf16.mxu0 %v108
  %186 = vmatpush1.bf16.msra.mxu0 %v108
  %187 = vmatprep.subr.bf16.mxu0 0
  %188 = vmatpush1.bf16.msra.mxu0 0
  %189 = vmatprep.subr.bf16.mxu0 0
  %190 = vmatpush1.bf16.msra.mxu0 0
  %191 = vmatprep.subr.bf16.mxu0 0
  %192 = vmatpush1.bf16.msra.mxu0 0
  %193 = vmatprep.subr.bf16.mxu0 0
  %194 = vmatpush1.bf16.msra.mxu0 0
  %195 = vmatprep.subr.bf16.mxu0 0
  %196 = vmatpush1.bf16.msra.mxu0 0
  %197 = vmatprep.subr.bf16.mxu0 0
  %198 = vmatpush1.bf16.msra.mxu0 0
  %199 = vmatprep.subr.bf16.mxu0 0
  %200 = vmatpush1.bf16.msra.mxu0 0
  %201 = vmatprep.subr.bf16.mxu0 0
  %202 = vmatpush1.bf16.msra.mxu0 0
  %203 = vmatprep.subr.bf16.mxu0 0
  %204 = vmatpush1.bf16.msra.mxu0 0
  %205 = vmatprep.subr.bf16.mxu0 0
  %206 = vmatpush1.bf16.msra.mxu0 0
  %207 = vmatprep.subr.bf16.mxu0 0
  %208 = vmatpush1.bf16.msra.mxu0 0
  %209 = vmatprep.subr.bf16.mxu0 0
  %210 = vmatpush1.bf16.msra.mxu0 0
  %211 = vmatprep.subr.bf16.mxu0 0
  %212 = vmatpush1.bf16.msra.mxu0 0
  %213 = vmatprep.subr.bf16.mxu0 0
  %214 = vmatpush1.bf16.msra.mxu0 0
  %215 = vmatprep.mubr.bf16.mxu0 0
  %216 = vmatmul.mubr.bf16.gmra.mrb[0].mxu0 %v93
  %v217 = vpop.f32.mrb[0].mxu0
  %v218 = vadd.f32 0.0, %v217
  %v219 = vpop.f32.mrb[0].mxu0
  %v220 = vadd.f32 0.0, %v219
  %v221 = vpop.f32.mrb[0].mxu0
  %v222 = vadd.f32 0.0, %v221
  %v223 = vpop.f32.mrb[0].mxu0
  %v224 = vadd.f32 0.0, %v223
  %225 = vmatprep.mubr.bf16.mxu0 0
  %226 = vmatmul.mubr.bf16.gmra.mrb[0].mxu0 %v96
  %v227 = vpop.f32.mrb[0].mxu0
  %v228 = vadd.f32 0.0, %v227
  %v229 = vpop.f32.mrb[0].mxu0
  %v230 = vadd.f32 0.0, %v229
  %v231 = vpop.f32.mrb[0].mxu0
  %v232 = vadd.f32 0.0, %v231
  %v233 = vpop.f32.mrb[0].mxu0
  %v234 = vadd.f32 0.0, %v233
  %235 = vmatprep.mubr.bf16.mxu0 0
  %236 = vmatmul.mubr.bf16.gmra.mrb[0].mxu0 %v99
  %v237 = vpop.f32.mrb[0].mxu0
  %v238 = vadd.f32 0.0, %v237
  %v239 = vpop.f32.mrb[0].mxu0
  %v240 = vadd.f32 0.0, %v239
  %v241 = vpop.f32.mrb[0].mxu0
  %v242 = vadd.f32 0.0, %v241
  %v243 = vpop.f32.mrb[0].mxu0
  %v244 = vadd.f32 0.0, %v243
  %245 = vmatprep.mubr.bf16.mxu0 0
  %246 = vmatmul.mubr.bf16.gmra.mrb[0].mxu0 %v102
  %v247 = vpop.f32.mrb[0].mxu0
  %v248 = vadd.f32 0.0, %v247
  %v249 = vpop.f32.mrb[0].mxu0
  %v250 = vadd.f32 0.0, %v249
  %v251 = vpop.f32.mrb[0].mxu0
  %v252 = vadd.f32 0.0, %v251
  %v253 = vpop.f32.mrb[0].mxu0
  %v254 = vadd.f32 0.0, %v253
  %255 = vdwg.mxu0
  %v256 = vmax.f32 %v145, 0.0
  %v257 = vmax.f32 %v147, 0.0
  %v258 = vmax.f32 %v218, 0.0
  %v259 = vmax.f32 %v220, 0.0
  %v260 = vmax.f32 %v149, 0.0
  %v261 = vmax.f32 %v151, 0.0
  %v262 = vmax.f32 %v222, 0.0
  %v263 = vmax.f32 %v224, 0.0
  %v264 = vmax.f32 %v155, 0.0
  %v265 = vmax.f32 %v157, 0.0
  %v266 = vmax.f32 %v228, 0.0
  %v267 = vmax.f32 %v230, 0.0
  %v268 = vmax.f32 %v159, 0.0
  %v269 = vmax.f32 %v161, 0.0
  %v270 = vmax.f32 %v232, 0.0
  %v271 = vmax.f32 %v234, 0.0
  %v272 = vmax.f32 %v165, 0.0
  %v273 = vmax.f32 %v167, 0.0
  %v274 = vmax.f32 %v238, 0.0
  %v275 = vmax.f32 %v240, 0.0
  %v276 = vmax.f32 %v169, 0.0
  %v277 = vmax.f32 %v171, 0.0
  %v278 = vmax.f32 %v242, 0.0
  %v279 = vmax.f32 %v244, 0.0
  %v280 = vmax.f32 %v175, 0.0
  %v281 = vmax.f32 %v177, 0.0
  %v282 = vmax.f32 %v248, 0.0
  %v283 = vmax.f32 %v250, 0.0
  %v284 = vmax.f32 %v179, 0.0
  %v285 = vmax.f32 %v181, 0.0
  %v286 = vmax.f32 %v252, 0.0
  %v287 = vmax.f32 %v254, 0.0
  %v288 = vpack.c.bf16 %v260, %v256
  %v289 = vpack.c.bf16 %v261, %v257
  %v290 = vpack.c.bf16 %v262, %v258
  %v291 = vpack.c.bf16 %v263, %v259
  %v292 = vpack.c.bf16 %v268, %v264
  %v293 = vpack.c.bf16 %v269, %v265
  %v294 = vpack.c.bf16 %v270, %v266
  %v295 = vpack.c.bf16 %v271, %v267
  %v296 = vpack.c.bf16 %v276, %v272
  %v297 = vpack.c.bf16 %v277, %v273
  %v298 = vpack.c.bf16 %v278, %v274
  %v299 = vpack.c.bf16 %v279, %v275
  %v300 = vpack.c.bf16 %v284, %v280
  %v301 = vpack.c.bf16 %v285, %v281
  %v302 = vpack.c.bf16 %v286, %v282
  %v303 = vpack.c.bf16 %v287, %v283
  %305 = vset.pattern.permute.xlu0 0
  %306 = vperm.xlu0 %305, %v38
  %v307 = vpop.permute.xlu0 %306
  %310 = vset.pattern.permute.xlu0 0
  %311 = vperm.xlu0 %310, %v39
  %v312 = vpop.permute.xlu0 %311
  %315 = vset.pattern.permute.xlu0 0
  %316 = vperm.xlu0 %315, %v40
  %v317 = vpop.permute.xlu0 %316
  %320 = vset.pattern.permute.xlu0 0
  %321 = vperm.xlu0 %320, %v41
  %v322 = vpop.permute.xlu0 %321
  %v328 = vunpack.c.l.b16 %v34
  %v329 = vunpack.c.l.b16 %v35
  %v330 = vunpack.c.l.b16 %v36
  %v331 = vunpack.c.l.b16 %v37
  %v332 = vpack.c.b16 %v329, %v328
  %v333 = vpack.c.b16 %v331, %v330
  %vm334 = vcmask 523264
  %v336 = vsel %vm334, %v332, 0
  %v339 = vsel %vm334, %v333, 0
  %341 = vmatprep.subr.bf16.mxu0 %v289
  %342 = vmatpush1.bf16.msra.mxu0 %v288
  %343 = vmatprep.subr.bf16.mxu0 %v293
  %344 = vmatpush1.bf16.msra.mxu0 %v292
  %345 = vmatprep.subr.bf16.mxu0 %v297
  %346 = vmatpush1.bf16.msra.mxu0 %v296
  %347 = vmatprep.subr.bf16.mxu0 %v301
  %348 = vmatpush1.bf16.msra.mxu0 %v300
  %349 = vmatprep.subr.bf16.mxu0 0
  %350 = vmatpush1.bf16.msra.mxu0 0
  %351 = vmatprep.subr.bf16.mxu0 0
  %352 = vmatpush1.bf16.msra.mxu0 0
  %353 = vmatprep.subr.bf16.mxu0 0
  %354 = vmatpush1.bf16.msra.mxu0 0
  %355 = vmatprep.subr.bf16.mxu0 0
  %356 = vmatpush1.bf16.msra.mxu0 0
  %357 = vmatprep.subr.bf16.mxu0 0
  %358 = vmatpush1.bf16.msra.mxu0 0
  %359 = vmatprep.subr.bf16.mxu0 0
  %360 = vmatpush1.bf16.msra.mxu0 0
  %361 = vmatprep.subr.bf16.mxu0 0
  %362 = vmatpush1.bf16.msra.mxu0 0
  %363 = vmatprep.subr.bf16.mxu0 0
  %364 = vmatpush1.bf16.msra.mxu0 0
  %365 = vmatprep.subr.bf16.mxu0 0
  %366 = vmatpush1.bf16.msra.mxu0 0
  %367 = vmatprep.subr.bf16.mxu0 0
  %368 = vmatpush1.bf16.msra.mxu0 0
  %369 = vmatprep.subr.bf16.mxu0 0
  %370 = vmatpush1.bf16.msra.mxu0 0
  %371 = vmatprep.subr.bf16.mxu0 0
  %372 = vmatpush1.bf16.msra.mxu0 0
  %373 = vmatprep.mubr.bf16.mxu0 0
  %374 = vmatmul.mubr.bf16.gmra.mrb[0].mxu0 %v336
  %v375 = vpop.f32.mrb[0].mxu0
  %v376 = vadd.f32 %v307, %v375
  %v377 = vpop.f32.mrb[0].mxu0
  %v378 = vadd.f32 %v307, %v377
  %v379 = vpop.f32.mrb[0].mxu0
  %v380 = vadd.f32 %v312, %v379
  %v381 = vpop.f32.mrb[0].mxu0
  %v382 = vadd.f32 %v312, %v381
  %383 = vmatprep.mubr.bf16.mxu0 0
  %384 = vmatmul.mubr.bf16.gmra.mrb[0].mxu0 %v339
  %v385 = vpop.f32.mrb[0].mxu0
  %v386 = vadd.f32 %v317, %v385
  %v387 = vpop.f32.mrb[0].mxu0
  %v388 = vadd.f32 %v317, %v387
  %v389 = vpop.f32.mrb[0].mxu0
  %v390 = vadd.f32 %v322, %v389
  %v391 = vpop.f32.mrb[0].mxu0
  %v392 = vadd.f32 %v322, %v391
  %393 = vdwg.mxu0
  %394 = vmatprep.subr.bf16.mxu0 %v291
  %395 = vmatpush1.bf16.msra.mxu0 %v290
  %396 = vmatprep.subr.bf16.mxu0 %v295
  %397 = vmatpush1.bf16.msra.mxu0 %v294
  %398 = vmatprep.subr.bf16.mxu0 %v299
  %399 = vmatpush1.bf16.msra.mxu0 %v298
  %400 = vmatprep.subr.bf16.mxu0 %v303
  %401 = vmatpush1.bf16.msra.mxu0 %v302
  %402 = vmatprep.subr.bf16.mxu0 0
  %403 = vmatpush1.bf16.msra.mxu0 0
  %404 = vmatprep.subr.bf16.mxu0 0
  %405 = vmatpush1.bf16.msra.mxu0 0
  %406 = vmatprep.subr.bf16.mxu0 0
  %407 = vmatpush1.bf16.msra.mxu0 0
  %408 = vmatprep.subr.bf16.mxu0 0
  %409 = vmatpush1.bf16.msra.mxu0 0
  %410 = vmatprep.subr.bf16.mxu0 0
  %411 = vmatpush1.bf16.msra.mxu0 0
  %412 = vmatprep.subr.bf16.mxu0 0
  %413 = vmatpush1.bf16.msra.mxu0 0
  %414 = vmatprep.subr.bf16.mxu0 0
  %415 = vmatpush1.bf16.msra.mxu0 0
  %416 = vmatprep.subr.bf16.mxu0 0
  %417 = vmatpush1.bf16.msra.mxu0 0
  %418 = vmatprep.subr.bf16.mxu0 0
  %419 = vmatpush1.bf16.msra.mxu0 0
  %420 = vmatprep.subr.bf16.mxu0 0
  %421 = vmatpush1.bf16.msra.mxu0 0
  %422 = vmatprep.subr.bf16.mxu0 0
  %423 = vmatpush1.bf16.msra.mxu0 0
  %424 = vmatprep.subr.bf16.mxu0 0
  %425 = vmatpush1.bf16.msra.mxu0 0
  %426 = vmatprep.mubr.bf16.mxu0 0
  %427 = vmatmul.mubr.bf16.gmra.mrb[0].mxu0 %v336
  %v428 = vpop.f32.mrb[0].mxu0
  %v429 = vadd.f32 %v307, %v428
  %v430 = vpop.f32.mrb[0].mxu0
  %v431 = vadd.f32 %v307, %v430
  %v432 = vpop.f32.mrb[0].mxu0
  %v433 = vadd.f32 %v312, %v432
  %v434 = vpop.f32.mrb[0].mxu0
  %v435 = vadd.f32 %v312, %v434
  %436 = vmatprep.mubr.bf16.mxu0 0
  %437 = vmatmul.mubr.bf16.gmra.mrb[0].mxu0 %v339
  %v438 = vpop.f32.mrb[0].mxu0
  %v439 = vadd.f32 %v317, %v438
  %v440 = vpop.f32.mrb[0].mxu0
  %v441 = vadd.f32 %v317, %v440
  %v442 = vpop.f32.mrb[0].mxu0
  %v443 = vadd.f32 %v322, %v442
  %v444 = vpop.f32.mrb[0].mxu0
  %v445 = vadd.f32 %v322, %v444
  %446 = vdwg.mxu0
  %v447 = vmax.f32 %v376, 0.0
  %v448 = vmax.f32 %v378, 0.0
  %v449 = vmax.f32 %v429, 0.0
  %v450 = vmax.f32 %v431, 0.0
  %v451 = vmax.f32 %v380, 0.0
  %v452 = vmax.f32 %v382, 0.0
  %v453 = vmax.f32 %v433, 0.0
  %v454 = vmax.f32 %v435, 0.0
  %v455 = vmax.f32 %v386, 0.0
  %v456 = vmax.f32 %v388, 0.0
  %v457 = vmax.f32 %v439, 0.0
  %v458 = vmax.f32 %v441, 0.0
  %v459 = vmax.f32 %v390, 0.0
  %v460 = vmax.f32 %v392, 0.0
  %v461 = vmax.f32 %v443, 0.0
  %v462 = vmax.f32 %v445, 0.0
  %464 = vset.pattern.permute.xlu0 0
  %465 = vperm.xlu0 %464, %v42
  %v466 = vpop.permute.xlu0 %465
  %469 = vset.pattern.permute.xlu0 0
  %470 = vperm.xlu0 %469, %v43
  %v471 = vpop.permute.xlu0 %470
  %474 = vset.pattern.permute.xlu0 0
  %475 = vperm.xlu0 %474, %v44
  %v476 = vpop.permute.xlu0 %475
  %479 = vset.pattern.permute.xlu0 0
  %480 = vperm.xlu0 %479, %v45
  %v481 = vpop.permute.xlu0 %480
  %v483 = vmul.f32 %v447, %v466
  %v484 = vmul.f32 %v448, %v466
  %v485 = vmul.f32 %v449, %v466
  %v486 = vmul.f32 %v450, %v466
  %v487 = vmul.f32 %v451, %v471
  %v488 = vmul.f32 %v452, %v471
  %v489 = vmul.f32 %v453, %v471
  %v490 = vmul.f32 %v454, %v471
  %v491 = vmul.f32 %v455, %v476
  %v492 = vmul.f32 %v456, %v476
  %v493 = vmul.f32 %v457, %v476
  %v494 = vmul.f32 %v458, %v476
  %v495 = vmul.f32 %v459, %v481
  %v496 = vmul.f32 %v460, %v481
  %v497 = vmul.f32 %v461, %v481
  %v498 = vmul.f32 %v462, %v481
  %v499 = vadd.f32 %v483, %v487
  %v500 = vadd.f32 %v499, %v491
  %v501 = vadd.f32 %v500, %v495
  %v502 = vrot.slane %v501, 4
  %v503 = vadd.f32 %v501, %v502
  %v504 = vrot.slane %v503, 2
  %v505 = vadd.f32 %v503, %v504
  %v506 = vrot.slane %v505, 1
  %v507 = vadd.f32 %v505, %v506
  %v508 = vadd.f32 %v484, %v488
  %v509 = vadd.f32 %v508, %v492
  %v510 = vadd.f32 %v509, %v496
  %v511 = vrot.slane %v510, 4
  %v512 = vadd.f32 %v510, %v511
  %v513 = vrot.slane %v512, 2
  %v514 = vadd.f32 %v512, %v513
  %v515 = vrot.slane %v514, 1
  %v516 = vadd.f32 %v514, %v515
  %v517 = vadd.f32 %v485, %v489
  %v518 = vadd.f32 %v517, %v493
  %v519 = vadd.f32 %v518, %v497
  %v520 = vrot.slane %v519, 4
  %v521 = vadd.f32 %v519, %v520
  %v522 = vrot.slane %v521, 2
  %v523 = vadd.f32 %v521, %v522
  %v524 = vrot.slane %v523, 1
  %v525 = vadd.f32 %v523, %v524
  %v526 = vadd.f32 %v486, %v490
  %v527 = vadd.f32 %v526, %v494
  %v528 = vadd.f32 %v527, %v498
  %v529 = vrot.slane %v528, 4
  %v530 = vadd.f32 %v528, %v529
  %v531 = vrot.slane %v530, 2
  %v532 = vadd.f32 %v530, %v531
  %v533 = vrot.slane %v532, 1
  %v534 = vadd.f32 %v532, %v533
  %v535 = vstv %s46
  %v536 = vadd.f32 %v507, %v535
  %v537 = vadd.f32 %v516, %v535
  %v538 = vadd.f32 %v525, %v535
  %v539 = vadd.f32 %v534, %v535
  %v544 = vcombine.low %v536, %v537
  %v545 = vcombine.low %v538, %v539
  %v547 = vunpack.c.l.s4 1966171168
  %v548 = vunpack.c.0.s8 %v547
  %v549 = vlaneseq
  %v550 = vshrl.u32 %v549, 7
  %v551 = vsub.s32 %v548, %v550
  %v552 = vrot.slane %v544, %v551
  %v554 = vunpack.c.l.s4 1966171168
  %v555 = vunpack.c.0.s8 %v554
  %v556 = vlaneseq
  %v557 = vshrl.u32 %v556, 7
  %v558 = vsub.s32 %v555, %v557
  %v559 = vrot.slane %v545, %v558
  %v560 = vcombine.low %v552, %v559
  %v562 = vunpack.c.l.s4 1966171168
  %v563 = vunpack.c.0.s8 %v562
  %v564 = vlaneseq
  %v565 = vshrl.u32 %v564, 7
  %v566 = vsub.s32 %v563, %v565
  %v567 = vrot.slane %v560, %v566
  %v569 = vlaneseq
  %vm570 = vcmp.ge.s32.totalorder %v569, 0
  %vm571 = vcmp.lt.s32.totalorder %v569, 512
  %vm572 = vmand %vm570, %vm571
  %573 = vst.msk [vmem:[%s6] sm:$0xf] %vm572, %v567
  // Predicated region
  $region26: #{depth_feature_extractor.1} parent=0 // pred_check
    _
  $region27: #{depth_feature_extractor.1} parent=0 // pred_check_branch
    %575 = sbr.rel (0) target = $region29
  $region28: #{depth_feature_extractor.1} parent=0 // pred_region
    _
  $region29: #{depth_feature_extractor.1} parent=0 // pred_fallthru
    _
  // Predicated region
  $region30: #{depth_feature_extractor.1} parent=0 // pred_check
    _
  $region31: #{depth_feature_extractor.1} parent=0 // pred_check_branch
    %577 = sbr.rel (0) target = $region33
  $region32: #{depth_feature_extractor.1} parent=0 // pred_region
    _
  $region33: #{depth_feature_extractor.1} parent=0 // pred_fallthru
    _

</llo_original>
